<compile_context>
chip_gen: v5e
topology: v5e:2x2
jax: 0.10.0
libtpu: 0.0.40
codegen_flags: <defaults>
</compile_context>

<pallas_src>
import jax
import jax.numpy as jnp
from jax.experimental import pallas as pl
from jax.experimental.pallas import tpu as pltpu


def _respred_kernel(x_ref, m_ref,
                    w1_ref, b1_ref, w2_ref, b2_ref, w3_ref, b3_ref,
                    p1_ref, pb1_ref, p2_ref, pb2_ref, p3_ref, pb3_ref,
                    out_ref):
    xf = x_ref[...]                     # [TB*N, F] bf16
    m = m_ref[...]                      # [TB, N]   f32 (1.0 valid / 0.0 pad)
    TB, N = m.shape

    # ---- ObjectEncoder: Linear(F->H) ReLU, Linear(H->H) ReLU, Linear(H->L) ----
    h = jnp.dot(xf, w1_ref[...], preferred_element_type=jnp.float32) + b1_ref[...]
    h = jnp.maximum(h, 0.0)
    h = jnp.dot(h.astype(jnp.bfloat16), w2_ref[...],
                preferred_element_type=jnp.float32) + b2_ref[...]
    h = jnp.maximum(h, 0.0)
    enc = jnp.dot(h.astype(jnp.bfloat16), w3_ref[...],
                  preferred_element_type=jnp.float32) + b3_ref[...]
    L = enc.shape[-1]
    # Layout-preserving when N % 8 == 0 (one sublane tile per batch element).
    enc = enc.reshape(TB, N, L)         # [TB, N, L] f32

    # ---- attention over objects (softmax along the object axis) ----
    scores = jnp.sum(enc, axis=-1)                       # [TB, N]
    scores = jnp.where(m > 0.5, scores, -1.0e9)          # masked_fill(~mask, -1e9)
    smax = jnp.max(scores, axis=1, keepdims=True)
    e = jnp.exp(scores - smax)
    attn = e / jnp.sum(e, axis=1, keepdims=True)         # [TB, N]

    # ---- weighted pooling (mask folded into the weights; exact PyTorch match
    #      including the all-masked edge case where pooled == 0) ----
    w = attn * m                                          # [TB, N]
    pooled = jnp.sum(enc * w[:, :, None], axis=1)         # [TB, L] f32

    # ---- predictor head: Linear(L->H) ReLU, Linear(H->H) ReLU, Linear(H->D) ----
    h = jnp.dot(pooled.astype(jnp.bfloat16), p1_ref[...],
                preferred_element_type=jnp.float32) + pb1_ref[...]
    h = jnp.maximum(h, 0.0)
    h = jnp.dot(h.astype(jnp.bfloat16), p2_ref[...],
                preferred_element_type=jnp.float32) + pb2_ref[...]
    h = jnp.maximum(h, 0.0)
    out = jnp.dot(h.astype(jnp.bfloat16), p3_ref[...],
                  preferred_element_type=jnp.float32) + pb3_ref[...]

    out_ref[...] = out.astype(out_ref.dtype)              # [TB, D]


def res_predictor_forward(x, mask, params, *, batch_tile=8):
    """x: [B, N, F] f32, mask: [B, N] f32 (1/0), params: dict of f32 weights."""
    B, N, F = x.shape
    H = params["w1"].shape[1]
    L = params["w3"].shape[1]
    D = params["p3"].shape[1]

    # Batch tile: block over batch elements; pad batch to a multiple of TB with
    # fully-masked rows (pooled==0 there, sliced off at the end).
    TB = min(batch_tile, B)
    Bp = pl.cdiv(B, TB) * TB
    if Bp != B:
        x = jnp.concatenate([x, jnp.zeros((Bp - B, N, F), x.dtype)], axis=0)
        mask = jnp.concatenate([mask, jnp.zeros((Bp - B, N), mask.dtype)], axis=0)

    # Wrapper-side flatten + bf16 cast (MXU inputs); accumulation stays f32.
    x_flat = x.reshape(Bp * N, F).astype(jnp.bfloat16)
    mask_f = mask.astype(jnp.float32)
    bf16 = lambda a: a.astype(jnp.bfloat16)

    args = (x_flat, mask_f,
            bf16(params["w1"]), params["b1"], bf16(params["w2"]), params["b2"],
            bf16(params["w3"]), params["b3"],
            bf16(params["p1"]), params["pb1"], bf16(params["p2"]), params["pb2"],
            bf16(params["p3"]), params["pb3"])

    # Per-batch-tile specs for the streaming inputs/output; constant-index
    # (fetch-once, VMEM-resident) specs for all weights and biases.
    in_specs = [
        pl.BlockSpec((TB * N, F), lambda b: (b, 0)),   # x rows for this tile
        pl.BlockSpec((TB, N), lambda b: (b, 0)),       # mask rows
    ] + [pl.BlockSpec(a.shape, lambda b: (0, 0)) for a in args[2:]]
    out_specs = pl.BlockSpec((TB, D), lambda b: (b, 0))

    # Advisory cost estimate so XLA schedules/overlaps this call sensibly.
    flops = 2 * Bp * N * (F * H + H * H + H * L) + 2 * Bp * (L * H + H * H + H * D)
    weight_bytes = sum(int(a.size) * a.dtype.itemsize for a in args[2:])
    bytes_accessed = (x_flat.size * 2 + mask_f.size * 4 + weight_bytes + Bp * D * 4)
    cost = pl.CostEstimate(flops=int(flops), transcendentals=int(Bp * N),
                           bytes_accessed=int(bytes_accessed))

    out = pl.pallas_call(
        _respred_kernel,
        out_shape=jax.ShapeDtypeStruct((Bp, D), jnp.float32),
        grid_spec=pltpu.PrefetchScalarGridSpec(
            num_scalar_prefetch=0,
            grid=(Bp // TB,),
            in_specs=in_specs,
            out_specs=out_specs,
        ),
        compiler_params=pltpu.CompilerParams(
            dimension_semantics=("parallel",)),   # v7x: shard batch tiles over 2 TCs
        cost_estimate=cost,
    )(*args)
    return out[:B]


# ----------------------------- reference & init -----------------------------

def _kaiming_normal(key, fan_in, fan_out):
    # PyTorch kaiming_normal_ (fan_in mode, gain=sqrt(2)), stored transposed
    # as [in, out] for right-multiplication.
    std = (2.0 / fan_in) ** 0.5
    return jax.random.normal(key, (fan_in, fan_out), dtype=jnp.float32) * std


def init_params(key, input_dim=11, hidden_dim=128, latent_dim=64, num_detectors=3):
    ks = jax.random.split(key, 6)
    return {
        # ObjectEncoder
        "w1": _kaiming_normal(ks[0], input_dim, hidden_dim),
        "b1": jnp.zeros((1, hidden_dim), jnp.float32),
        "w2": _kaiming_normal(ks[1], hidden_dim, hidden_dim),
        "b2": jnp.zeros((1, hidden_dim), jnp.float32),
        "w3": _kaiming_normal(ks[2], hidden_dim, latent_dim),
        "b3": jnp.zeros((1, latent_dim), jnp.float32),
        # Predictor head
        "p1": _kaiming_normal(ks[3], latent_dim, hidden_dim),
        "pb1": jnp.zeros((1, hidden_dim), jnp.float32),
        "p2": _kaiming_normal(ks[4], hidden_dim, hidden_dim),
        "pb2": jnp.zeros((1, hidden_dim), jnp.float32),
        "p3": _kaiming_normal(ks[5], hidden_dim, num_detectors),
        "pb3": jnp.zeros((1, num_detectors), jnp.float32),
    }


def reference_forward(x, mask, params):
    """Pure-JAX f32 reference matching the PyTorch module."""
    B, N, F = x.shape
    xf = x.reshape(B * N, F)
    h = jnp.maximum(xf @ params["w1"] + params["b1"], 0.0)
    h = jnp.maximum(h @ params["w2"] + params["b2"], 0.0)
    enc = (h @ params["w3"] + params["b3"]).reshape(B, N, -1)
    enc = enc * mask[:, :, None]
    scores = jnp.sum(enc, axis=-1)
    scores = jnp.where(mask > 0.5, scores, -1.0e9)
    attn = jax.nn.softmax(scores, axis=1)
    pooled = jnp.sum(enc * attn[:, :, None], axis=1)
    h = jnp.maximum(pooled @ params["p1"] + params["pb1"], 0.0)
    h = jnp.maximum(h @ params["p2"] + params["pb2"], 0.0)
    return h @ params["p3"] + params["pb3"]


if __name__ == "__main__":
    key = jax.random.PRNGKey(0)
    k_x, k_p = jax.random.split(key)

    B, N, F = 16, 8, 11            # batch, num_objects, feature_dim
    H, L, D = 128, 64, 3
    x = jax.random.normal(k_x, (B, N, F), dtype=jnp.float32)

    # mask: mark a few trailing objects as padding
    mask = jnp.ones((B, N), jnp.float32)
    mask = mask.at[1, N - 2:].set(0.0)
    mask = mask.at[5, N - 3:].set(0.0)

    params = init_params(k_p, input_dim=F, hidden_dim=H, latent_dim=L,
                         num_detectors=D)

    out = res_predictor_forward(x, mask, params, batch_tile=8)
    out = jax.block_until_ready(out)

    assert out.shape == (B, D) and out.dtype == jnp.float32
    assert bool(jnp.all(jnp.isfinite(out)))

    # Validate against the f32 reference (bf16 MXU inputs -> loose tolerance).
    ref = reference_forward(x, mask, params)
    max_err = float(jnp.max(jnp.abs(out - ref)))
    assert max_err < 1e-1, f"max abs error vs reference too large: {max_err}"

    print("KERNEL_OK")
</pallas_src>

<mosaic_0001>
module attributes {stable_mosaic.version = 11 : i64} {
  func.func @_respred_kernel(%arg0: i32, %arg1: memref<64x11xbf16, #tpu.memory_space<vmem>>, %arg2: memref<8x8xf32, #tpu.memory_space<vmem>>, %arg3: memref<11x128xbf16, #tpu.memory_space<vmem>>, %arg4: memref<1x128xf32, #tpu.memory_space<vmem>>, %arg5: memref<128x128xbf16, #tpu.memory_space<vmem>>, %arg6: memref<1x128xf32, #tpu.memory_space<vmem>>, %arg7: memref<128x64xbf16, #tpu.memory_space<vmem>>, %arg8: memref<1x64xf32, #tpu.memory_space<vmem>>, %arg9: memref<64x128xbf16, #tpu.memory_space<vmem>>, %arg10: memref<1x128xf32, #tpu.memory_space<vmem>>, %arg11: memref<128x128xbf16, #tpu.memory_space<vmem>>, %arg12: memref<1x128xf32, #tpu.memory_space<vmem>>, %arg13: memref<128x3xbf16, #tpu.memory_space<vmem>>, %arg14: memref<1x3xf32, #tpu.memory_space<vmem>>, %arg15: memref<8x3xf32, #tpu.memory_space<vmem>>) attributes {dimension_semantics = [#tpu.dimension_semantics<parallel>], iteration_bounds = array<i64: 2>, scalar_prefetch = 0 : i64, scratch_operands = 0 : i64, tpu.core_type = #tpu.core_type<tc>, window_params = [{transform_indices = @transform_0, window_bounds = array<i64: 64, 11>}, {transform_indices = @transform_1, window_bounds = array<i64: 8, 8>}, {pipeline_mode = #tpu.pipeline_mode<synchronous>, transform_indices = @transform_2, window_bounds = array<i64: 11, 128>}, {pipeline_mode = #tpu.pipeline_mode<synchronous>, transform_indices = @transform_3, window_bounds = array<i64: 1, 128>}, {pipeline_mode = #tpu.pipeline_mode<synchronous>, transform_indices = @transform_4, window_bounds = array<i64: 128, 128>}, {pipeline_mode = #tpu.pipeline_mode<synchronous>, transform_indices = @transform_5, window_bounds = array<i64: 1, 128>}, {pipeline_mode = #tpu.pipeline_mode<synchronous>, transform_indices = @transform_6, window_bounds = array<i64: 128, 64>}, {pipeline_mode = #tpu.pipeline_mode<synchronous>, transform_indices = @transform_7, window_bounds = array<i64: 1, 64>}, {pipeline_mode = #tpu.pipeline_mode<synchronous>, transform_indices = @transform_8, window_bounds = array<i64: 64, 128>}, {pipeline_mode = #tpu.pipeline_mode<synchronous>, transform_indices = @transform_9, window_bounds = array<i64: 1, 128>}, {pipeline_mode = #tpu.pipeline_mode<synchronous>, transform_indices = @transform_10, window_bounds = array<i64: 128, 128>}, {pipeline_mode = #tpu.pipeline_mode<synchronous>, transform_indices = @transform_11, window_bounds = array<i64: 1, 128>}, {pipeline_mode = #tpu.pipeline_mode<synchronous>, transform_indices = @transform_12, window_bounds = array<i64: 128, 3>}, {pipeline_mode = #tpu.pipeline_mode<synchronous>, transform_indices = @transform_13, window_bounds = array<i64: 1, 3>}, {transform_indices = @transform_14, window_bounds = array<i64: 8, 3>}]} {
    %c0 = arith.constant 0 : index
    %c0_0 = arith.constant 0 : index
    %0 = vector.load %arg1[%c0, %c0_0] : memref<64x11xbf16, #tpu.memory_space<vmem>>, vector<64x11xbf16>
    %c0_1 = arith.constant 0 : index
    %c0_2 = arith.constant 0 : index
    %1 = vector.load %arg2[%c0_1, %c0_2] : memref<8x8xf32, #tpu.memory_space<vmem>>, vector<8x8xf32>
    %c0_3 = arith.constant 0 : index
    %c0_4 = arith.constant 0 : index
    %2 = vector.load %arg3[%c0_3, %c0_4] : memref<11x128xbf16, #tpu.memory_space<vmem>>, vector<11x128xbf16>
    %cst = arith.constant dense<0.000000e+00> : vector<64x128xf32>
    %3 = tpu.matmul %0, %2, %cst {dimension_numbers = #tpu.dot_dimension_numbers<[1], [0], [0], [1], [0, 0, 1, 1], [], []>} : vector<64x11xbf16>, vector<11x128xbf16>, vector<64x128xf32> -> vector<64x128xf32>
    %c0_5 = arith.constant 0 : index
    %c0_6 = arith.constant 0 : index
    %4 = vector.load %arg4[%c0_5, %c0_6] : memref<1x128xf32, #tpu.memory_space<vmem>>, vector<1x128xf32>
    %5 = vector.broadcast %4 : vector<1x128xf32> to vector<64x128xf32>
    %6 = arith.addf %3, %5 : vector<64x128xf32>
    %cst_7 = arith.constant 0.000000e+00 : f32
    %7 = vector.broadcast %cst_7 : f32 to vector<64x128xf32>
    %8 = arith.maximumf %6, %7 : vector<64x128xf32>
    %9 = arith.truncf %8 : vector<64x128xf32> to vector<64x128xbf16>
    %c0_8 = arith.constant 0 : index
    %c0_9 = arith.constant 0 : index
    %10 = vector.load %arg5[%c0_8, %c0_9] : memref<128x128xbf16, #tpu.memory_space<vmem>>, vector<128x128xbf16>
    %cst_10 = arith.constant dense<0.000000e+00> : vector<64x128xf32>
    %11 = tpu.matmul %9, %10, %cst_10 {dimension_numbers = #tpu.dot_dimension_numbers<[1], [0], [0], [1], [0, 0, 1, 1], [], []>} : vector<64x128xbf16>, vector<128x128xbf16>, vector<64x128xf32> -> vector<64x128xf32>
    %c0_11 = arith.constant 0 : index
    %c0_12 = arith.constant 0 : index
    %12 = vector.load %arg6[%c0_11, %c0_12] : memref<1x128xf32, #tpu.memory_space<vmem>>, vector<1x128xf32>
    %13 = vector.broadcast %12 : vector<1x128xf32> to vector<64x128xf32>
    %14 = arith.addf %11, %13 : vector<64x128xf32>
    %cst_13 = arith.constant 0.000000e+00 : f32
    %15 = vector.broadcast %cst_13 : f32 to vector<64x128xf32>
    %16 = arith.maximumf %14, %15 : vector<64x128xf32>
    %17 = arith.truncf %16 : vector<64x128xf32> to vector<64x128xbf16>
    %c0_14 = arith.constant 0 : index
    %c0_15 = arith.constant 0 : index
    %18 = vector.load %arg7[%c0_14, %c0_15] : memref<128x64xbf16, #tpu.memory_space<vmem>>, vector<128x64xbf16>
    %cst_16 = arith.constant dense<0.000000e+00> : vector<64x64xf32>
    %19 = tpu.matmul %17, %18, %cst_16 {dimension_numbers = #tpu.dot_dimension_numbers<[1], [0], [0], [1], [0, 0, 1, 1], [], []>} : vector<64x128xbf16>, vector<128x64xbf16>, vector<64x64xf32> -> vector<64x64xf32>
    %c0_17 = arith.constant 0 : index
    %c0_18 = arith.constant 0 : index
    %20 = vector.load %arg8[%c0_17, %c0_18] : memref<1x64xf32, #tpu.memory_space<vmem>>, vector<1x64xf32>
    %21 = vector.broadcast %20 : vector<1x64xf32> to vector<64x64xf32>
    %22 = arith.addf %19, %21 : vector<64x64xf32>
    %23 = vector.shape_cast %22 : vector<64x64xf32> to vector<8x8x64xf32>
    %cst_19 = arith.constant dense<0.000000e+00> : vector<8x8xf32>
    %24 = vector.multi_reduction <add>, %23, %cst_19 [2] : vector<8x8x64xf32> to vector<8x8xf32>
    %cst_20 = arith.constant 5.000000e-01 : f32
    %25 = vector.broadcast %cst_20 : f32 to vector<8x8xf32>
    %26 = arith.cmpf ogt, %1, %25 : vector<8x8xf32>
    %cst_21 = arith.constant -1.000000e+09 : f32
    %27 = vector.broadcast %cst_21 : f32 to vector<8x8xf32>
    %28 = arith.select %26, %24, %27 : vector<8x8xi1>, vector<8x8xf32>
    %cst_22 = arith.constant dense<0xFF800000> : vector<8xf32>
    %29 = vector.multi_reduction <maximumf>, %28, %cst_22 [1] : vector<8x8xf32> to vector<8xf32>
    %30 = vector.shape_cast %29 : vector<8xf32> to vector<8x1xf32>
    %31 = vector.broadcast %30 : vector<8x1xf32> to vector<8x8xf32>
    %32 = arith.subf %28, %31 : vector<8x8xf32>
    %33 = math.exp %32 : vector<8x8xf32>
    %cst_23 = arith.constant dense<0.000000e+00> : vector<8xf32>
    %34 = vector.multi_reduction <add>, %33, %cst_23 [1] : vector<8x8xf32> to vector<8xf32>
    %35 = vector.shape_cast %34 : vector<8xf32> to vector<8x1xf32>
    %36 = vector.broadcast %35 : vector<8x1xf32> to vector<8x8xf32>
    %37 = arith.divf %33, %36 : vector<8x8xf32>
    %38 = arith.mulf %37, %1 : vector<8x8xf32>
    %39 = vector.shape_cast %38 : vector<8x8xf32> to vector<8x8x1xf32>
    %40 = vector.broadcast %39 : vector<8x8x1xf32> to vector<8x8x64xf32>
    %41 = arith.mulf %23, %40 : vector<8x8x64xf32>
    %cst_24 = arith.constant dense<0.000000e+00> : vector<8x64xf32>
    %42 = vector.multi_reduction <add>, %41, %cst_24 [1] : vector<8x8x64xf32> to vector<8x64xf32>
    %43 = arith.truncf %42 : vector<8x64xf32> to vector<8x64xbf16>
    %c0_25 = arith.constant 0 : index
    %c0_26 = arith.constant 0 : index
    %44 = vector.load %arg9[%c0_25, %c0_26] : memref<64x128xbf16, #tpu.memory_space<vmem>>, vector<64x128xbf16>
    %cst_27 = arith.constant dense<0.000000e+00> : vector<8x128xf32>
    %45 = tpu.matmul %43, %44, %cst_27 {dimension_numbers = #tpu.dot_dimension_numbers<[1], [0], [0], [1], [0, 0, 1, 1], [], []>} : vector<8x64xbf16>, vector<64x128xbf16>, vector<8x128xf32> -> vector<8x128xf32>
    %c0_28 = arith.constant 0 : index
    %c0_29 = arith.constant 0 : index
    %46 = vector.load %arg10[%c0_28, %c0_29] : memref<1x128xf32, #tpu.memory_space<vmem>>, vector<1x128xf32>
    %47 = vector.broadcast %46 : vector<1x128xf32> to vector<8x128xf32>
    %48 = arith.addf %45, %47 : vector<8x128xf32>
    %cst_30 = arith.constant 0.000000e+00 : f32
    %49 = vector.broadcast %cst_30 : f32 to vector<8x128xf32>
    %50 = arith.maximumf %48, %49 : vector<8x128xf32>
    %51 = arith.truncf %50 : vector<8x128xf32> to vector<8x128xbf16>
    %c0_31 = arith.constant 0 : index
    %c0_32 = arith.constant 0 : index
    %52 = vector.load %arg11[%c0_31, %c0_32] : memref<128x128xbf16, #tpu.memory_space<vmem>>, vector<128x128xbf16>
    %cst_33 = arith.constant dense<0.000000e+00> : vector<8x128xf32>
    %53 = tpu.matmul %51, %52, %cst_33 {dimension_numbers = #tpu.dot_dimension_numbers<[1], [0], [0], [1], [0, 0, 1, 1], [], []>} : vector<8x128xbf16>, vector<128x128xbf16>, vector<8x128xf32> -> vector<8x128xf32>
    %c0_34 = arith.constant 0 : index
    %c0_35 = arith.constant 0 : index
    %54 = vector.load %arg12[%c0_34, %c0_35] : memref<1x128xf32, #tpu.memory_space<vmem>>, vector<1x128xf32>
    %55 = vector.broadcast %54 : vector<1x128xf32> to vector<8x128xf32>
    %56 = arith.addf %53, %55 : vector<8x128xf32>
    %cst_36 = arith.constant 0.000000e+00 : f32
    %57 = vector.broadcast %cst_36 : f32 to vector<8x128xf32>
    %58 = arith.maximumf %56, %57 : vector<8x128xf32>
    %59 = arith.truncf %58 : vector<8x128xf32> to vector<8x128xbf16>
    %c0_37 = arith.constant 0 : index
    %c0_38 = arith.constant 0 : index
    %60 = vector.load %arg13[%c0_37, %c0_38] : memref<128x3xbf16, #tpu.memory_space<vmem>>, vector<128x3xbf16>
    %cst_39 = arith.constant dense<0.000000e+00> : vector<8x3xf32>
    %61 = tpu.matmul %59, %60, %cst_39 {dimension_numbers = #tpu.dot_dimension_numbers<[1], [0], [0], [1], [0, 0, 1, 1], [], []>} : vector<8x128xbf16>, vector<128x3xbf16>, vector<8x3xf32> -> vector<8x3xf32>
    %c0_40 = arith.constant 0 : index
    %c0_41 = arith.constant 0 : index
    %62 = vector.load %arg14[%c0_40, %c0_41] : memref<1x3xf32, #tpu.memory_space<vmem>>, vector<1x3xf32>
    %63 = vector.broadcast %62 : vector<1x3xf32> to vector<8x3xf32>
    %64 = arith.addf %61, %63 : vector<8x3xf32>
    %c0_42 = arith.constant 0 : index
    %c0_43 = arith.constant 0 : index
    %65 = vector.load %arg15[%c0_42, %c0_43] : memref<8x3xf32, #tpu.memory_space<vmem>>, vector<8x3xf32>
    tpu.vector_store %arg15[%c0_42, %c0_43], %64 {strides = array<i32>} : memref<8x3xf32, #tpu.memory_space<vmem>>, vector<8x3xf32>,
    return
  }
  func.func @transform_0(%arg0: i32) -> (i32, i32) {
    %c0_i32 = arith.constant 0 : i32
    %c0_i32_0 = arith.constant 0 : i32
    return %arg0, %c0_i32 : i32, i32
  }
  func.func @transform_1(%arg0: i32) -> (i32, i32) {
    %c0_i32 = arith.constant 0 : i32
    %c0_i32_0 = arith.constant 0 : i32
    return %arg0, %c0_i32 : i32, i32
  }
  func.func @transform_2(%arg0: i32) -> (i32, i32) {
    %c0_i32 = arith.constant 0 : i32
    %c0_i32_0 = arith.constant 0 : i32
    %c0_i32_1 = arith.constant 0 : i32
    return %c0_i32, %c0_i32_0 : i32, i32
  }
  func.func @transform_3(%arg0: i32) -> (i32, i32) {
    %c0_i32 = arith.constant 0 : i32
    %c0_i32_0 = arith.constant 0 : i32
    %c0_i32_1 = arith.constant 0 : i32
    return %c0_i32, %c0_i32_0 : i32, i32
  }
  func.func @transform_4(%arg0: i32) -> (i32, i32) {
    %c0_i32 = arith.constant 0 : i32
    %c0_i32_0 = arith.constant 0 : i32
    %c0_i32_1 = arith.constant 0 : i32
    return %c0_i32, %c0_i32_0 : i32, i32
  }
  func.func @transform_5(%arg0: i32) -> (i32, i32) {
    %c0_i32 = arith.constant 0 : i32
    %c0_i32_0 = arith.constant 0 : i32
    %c0_i32_1 = arith.constant 0 : i32
    return %c0_i32, %c0_i32_0 : i32, i32
  }
  func.func @transform_6(%arg0: i32) -> (i32, i32) {
    %c0_i32 = arith.constant 0 : i32
    %c0_i32_0 = arith.constant 0 : i32
    %c0_i32_1 = arith.constant 0 : i32
    return %c0_i32, %c0_i32_0 : i32, i32
  }
  func.func @transform_7(%arg0: i32) -> (i32, i32) {
    %c0_i32 = arith.constant 0 : i32
    %c0_i32_0 = arith.constant 0 : i32
    %c0_i32_1 = arith.constant 0 : i32
    return %c0_i32, %c0_i32_0 : i32, i32
  }
  func.func @transform_8(%arg0: i32) -> (i32, i32) {
    %c0_i32 = arith.constant 0 : i32
    %c0_i32_0 = arith.constant 0 : i32
    %c0_i32_1 = arith.constant 0 : i32
    return %c0_i32, %c0_i32_0 : i32, i32
  }
  func.func @transform_9(%arg0: i32) -> (i32, i32) {
    %c0_i32 = arith.constant 0 : i32
    %c0_i32_0 = arith.constant 0 : i32
    %c0_i32_1 = arith.constant 0 : i32
    return %c0_i32, %c0_i32_0 : i32, i32
  }
  func.func @transform_10(%arg0: i32) -> (i32, i32) {
    %c0_i32 = arith.constant 0 : i32
    %c0_i32_0 = arith.constant 0 : i32
    %c0_i32_1 = arith.constant 0 : i32
    return %c0_i32, %c0_i32_0 : i32, i32
  }
  func.func @transform_11(%arg0: i32) -> (i32, i32) {
    %c0_i32 = arith.constant 0 : i32
    %c0_i32_0 = arith.constant 0 : i32
    %c0_i32_1 = arith.constant 0 : i32
    return %c0_i32, %c0_i32_0 : i32, i32
  }
  func.func @transform_12(%arg0: i32) -> (i32, i32) {
    %c0_i32 = arith.constant 0 : i32
    %c0_i32_0 = arith.constant 0 : i32
    %c0_i32_1 = arith.constant 0 : i32
    return %c0_i32, %c0_i32_0 : i32, i32
  }
  func.func @transform_13(%arg0: i32) -> (i32, i32) {
    %c0_i32 = arith.constant 0 : i32
    %c0_i32_0 = arith.constant 0 : i32
    %c0_i32_1 = arith.constant 0 : i32
    return %c0_i32, %c0_i32_0 : i32, i32
  }
  func.func @transform_14(%arg0: i32) -> (i32, i32) {
    %c0_i32 = arith.constant 0 : i32
    %c0_i32_0 = arith.constant 0 : i32
    return %arg0, %c0_i32 : i32, i32
  }
}

</mosaic_0001>

<llo_original>
// kernel: tpu_custom_call.1
$region0: #{tpu_custom_call.1}
  #allocation0 [shape = 'u32[]', space=smem, size = 0x4, offset = 0x4, fixed_abs, tag = 'smem constant byte address 0x4 - core index']
  #allocation1 [shape = 'u32[72,128]{1,0:T(1,128)}', space=vmem, size = 0x9000, scoped, tag = 'internal scratch']
  %s0 = inlined_call_operand.vmem [shape: bf16[128,11], index: 0, kind: input, shape index: {}]
  %s1 = inlined_call_operand.vmem [shape: f32[16,8], index: 1, kind: input, shape index: {}]
  %s2 = inlined_call_operand.vmem [shape: bf16[11,128], index: 2, kind: input, shape index: {}]
  %s3 = inlined_call_operand.vmem [shape: f32[1,128], index: 3, kind: input, shape index: {}]
  %s4 = inlined_call_operand.vmem [shape: bf16[128,128], index: 4, kind: input, shape index: {}]
  %s5 = inlined_call_operand.vmem [shape: f32[1,128], index: 5, kind: input, shape index: {}]
  %s6 = inlined_call_operand.vmem [shape: bf16[128,64], index: 6, kind: input, shape index: {}]
  %s7 = inlined_call_operand.vmem [shape: f32[1,64], index: 7, kind: input, shape index: {}]
  %s8 = inlined_call_operand.vmem [shape: bf16[64,128], index: 8, kind: input, shape index: {}]
  %s9 = inlined_call_operand.vmem [shape: f32[1,128], index: 9, kind: input, shape index: {}]
  %s10 = inlined_call_operand.vmem [shape: bf16[128,128], index: 10, kind: input, shape index: {}]
  %s11 = inlined_call_operand.vmem [shape: f32[1,128], index: 11, kind: input, shape index: {}]
  %s12 = inlined_call_operand.vmem [shape: bf16[128,3], index: 12, kind: input, shape index: {}]
  %s13 = inlined_call_operand.vmem [shape: f32[1,3], index: 13, kind: input, shape index: {}]
  %s14 = inlined_call_operand.vmem [shape: f32[16,3], index: 14, kind: output, shape index: {}]
  %s15 = sld [smem:[#allocation0]]
  $region89: #{tpu_custom_call.1} parent=0
    _
  %s17 = ssub.s32 1, %s15
  %s18 = scalar_select 0, %s17, %s15
  loop: start=0, step=1, limit=4
  $region2: #{tpu_custom_call.1} parent=0 // loop_pre_header
    _
  $region3: #{tpu_custom_call.1} parent=0 // loop_header
    %s20 = sphi 0, %s24
    %p21 = scmp.ge.s32.totalorder %s20, 4
    %s30 = sphi 0, %s32
    %s33 = sphi 0, %s30
    %s34 = sphi 0, %s33
    %s50 = sphi 0, %s34
    %s56 = sphi 0, %s58
    %s59 = sphi 0, %s56
    %s60 = sphi 0, %s59
    %s76 = sphi 0, %s60
    %s80 = sphi 0, %s80
    %s82 = sphi 0, %s80
    %s83 = sphi 0, %s82
    %s97 = sphi 0, %s83
    %s101 = sphi 0, %s101
    %s103 = sphi 0, %s101
    %s104 = sphi 0, %s103
    %s118 = sphi 0, %s104
    %s122 = sphi 0, %s122
    %s124 = sphi 0, %s122
    %s125 = sphi 0, %s124
    %s139 = sphi 0, %s125
    %s143 = sphi 0, %s143
    %s145 = sphi 0, %s143
    %s146 = sphi 0, %s145
    %s160 = sphi 0, %s146
    %s164 = sphi 0, %s164
    %s166 = sphi 0, %s164
    %s167 = sphi 0, %s166
    %s181 = sphi 0, %s167
    %s185 = sphi 0, %s185
    %s187 = sphi 0, %s185
    %s188 = sphi 0, %s187
    %s202 = sphi 0, %s188
    %s206 = sphi 0, %s206
    %s208 = sphi 0, %s206
    %s209 = sphi 0, %s208
    %s223 = sphi 0, %s209
    %s227 = sphi 0, %s227
    %s229 = sphi 0, %s227
    %s230 = sphi 0, %s229
    %s244 = sphi 0, %s230
    %s248 = sphi 0, %s248
    %s250 = sphi 0, %s248
    %s251 = sphi 0, %s250
    %s265 = sphi 0, %s251
    %s269 = sphi 0, %s269
    %s271 = sphi 0, %s269
    %s272 = sphi 0, %s271
    %s286 = sphi 0, %s272
    %s290 = sphi 0, %s290
    %s292 = sphi 0, %s290
    %s293 = sphi 0, %s292
    %s307 = sphi 0, %s293
    %s311 = sphi 0, %s311
    %s313 = sphi 0, %s311
    %s314 = sphi 0, %s313
    %s328 = sphi 0, %s314
    %s334 = sphi 0, %s336
    %s337 = sphi 0, %s334
    %s338 = sphi 0, %s337
    %s354 = sphi 0, %s338
  $region4: #{tpu_custom_call.1} parent=0 // loop_header_branch
    %23 = sbr.rel (%p21) target = $region8
  $region5: #{tpu_custom_call.1} parent=0 // loop_body
    %s25 = ssub.s32 %s20, 1
    %s26 = ssub.s32 %s20, 2
    %s27 = sadd.s32 %s20, 1
    %s28 = ssub.s32 %s20, %s27
    %p29 = scmp.eq.s32.totalorder %s28, 0
    %s31 = sadd.s32 %s30, 1
    %s32 = scalar_select %p29, %s30, %s31
    %p35 = pneg %p29
    %p36 = scmp.eq.s32.totalorder %s20, 1
    %p37 = por %p35, %p36
    %p38 = scmp.ne.s32.totalorder %s30, %s33
    %p39 = scmp.eq.s32.totalorder %s20, 0
    %p40 = por %p38, %p39
    %p41 = scmp.ne.s32.totalorder %s30, %s33
    %p42 = scmp.eq.s32.totalorder %s25, 1
    %p43 = por %p41, %p42
    %p44 = scmp.ne.s32.totalorder %s33, %s34
    %p45 = scmp.eq.s32.totalorder %s25, 0
    %p46 = por %p44, %p45
    %p47 = scmp.ne.s32.totalorder %s33, %s34
    %p48 = scmp.eq.s32.totalorder %s26, 1
    %p49 = por %p47, %p48
    %p51 = scmp.ne.s32.totalorder %s34, %s50
    %p52 = scmp.eq.s32.totalorder %s26, 0
    %p53 = por %p51, %p52
    %s54 = ssub.s32 %s20, %s27
    %p55 = scmp.eq.s32.totalorder %s54, 0
    %s57 = sadd.s32 %s56, 1
    %s58 = scalar_select %p55, %s56, %s57
    %p61 = pneg %p55
    %p62 = scmp.eq.s32.totalorder %s20, 1
    %p63 = por %p61, %p62
    %p64 = scmp.ne.s32.totalorder %s56, %s59
    %p65 = scmp.eq.s32.totalorder %s20, 0
    %p66 = por %p64, %p65
    %p67 = scmp.ne.s32.totalorder %s56, %s59
    %p68 = scmp.eq.s32.totalorder %s25, 1
    %p69 = por %p67, %p68
    %p70 = scmp.ne.s32.totalorder %s59, %s60
    %p71 = scmp.eq.s32.totalorder %s25, 0
    %p72 = por %p70, %p71
    %p73 = scmp.ne.s32.totalorder %s59, %s60
    %p74 = scmp.eq.s32.totalorder %s26, 1
    %p75 = por %p73, %p74
    %p77 = scmp.ne.s32.totalorder %s60, %s76
    %p78 = scmp.eq.s32.totalorder %s26, 0
    %p79 = por %p77, %p78
    %s81 = sadd.s32 %s80, 1
    %p84 = scmp.eq.s32.totalorder %s20, 1
    %p85 = scmp.ne.s32.totalorder %s80, %s82
    %p86 = scmp.eq.s32.totalorder %s20, 0
    %p87 = por %p85, %p86
    %p88 = scmp.ne.s32.totalorder %s80, %s82
    %p89 = scmp.eq.s32.totalorder %s25, 1
    %p90 = por %p88, %p89
    %p91 = scmp.ne.s32.totalorder %s82, %s83
    %p92 = scmp.eq.s32.totalorder %s25, 0
    %p93 = por %p91, %p92
    %p94 = scmp.ne.s32.totalorder %s82, %s83
    %p95 = scmp.eq.s32.totalorder %s26, 1
    %p96 = por %p94, %p95
    %p98 = scmp.ne.s32.totalorder %s83, %s97
    %p99 = scmp.eq.s32.totalorder %s26, 0
    %p100 = por %p98, %p99
    %s102 = sadd.s32 %s101, 1
    %p105 = scmp.eq.s32.totalorder %s20, 1
    %p106 = scmp.ne.s32.totalorder %s101, %s103
    %p107 = scmp.eq.s32.totalorder %s20, 0
    %p108 = por %p106, %p107
    %p109 = scmp.ne.s32.totalorder %s101, %s103
    %p110 = scmp.eq.s32.totalorder %s25, 1
    %p111 = por %p109, %p110
    %p112 = scmp.ne.s32.totalorder %s103, %s104
    %p113 = scmp.eq.s32.totalorder %s25, 0
    %p114 = por %p112, %p113
    %p115 = scmp.ne.s32.totalorder %s103, %s104
    %p116 = scmp.eq.s32.totalorder %s26, 1
    %p117 = por %p115, %p116
    %p119 = scmp.ne.s32.totalorder %s104, %s118
    %p120 = scmp.eq.s32.totalorder %s26, 0
    %p121 = por %p119, %p120
    %s123 = sadd.s32 %s122, 1
    %p126 = scmp.eq.s32.totalorder %s20, 1
    %p127 = scmp.ne.s32.totalorder %s122, %s124
    %p128 = scmp.eq.s32.totalorder %s20, 0
    %p129 = por %p127, %p128
    %p130 = scmp.ne.s32.totalorder %s122, %s124
    %p131 = scmp.eq.s32.totalorder %s25, 1
    %p132 = por %p130, %p131
    %p133 = scmp.ne.s32.totalorder %s124, %s125
    %p134 = scmp.eq.s32.totalorder %s25, 0
    %p135 = por %p133, %p134
    %p136 = scmp.ne.s32.totalorder %s124, %s125
    %p137 = scmp.eq.s32.totalorder %s26, 1
    %p138 = por %p136, %p137
    %p140 = scmp.ne.s32.totalorder %s125, %s139
    %p141 = scmp.eq.s32.totalorder %s26, 0
    %p142 = por %p140, %p141
    %s144 = sadd.s32 %s143, 1
    %p147 = scmp.eq.s32.totalorder %s20, 1
    %p148 = scmp.ne.s32.totalorder %s143, %s145
    %p149 = scmp.eq.s32.totalorder %s20, 0
    %p150 = por %p148, %p149
    %p151 = scmp.ne.s32.totalorder %s143, %s145
    %p152 = scmp.eq.s32.totalorder %s25, 1
    %p153 = por %p151, %p152
    %p154 = scmp.ne.s32.totalorder %s145, %s146
    %p155 = scmp.eq.s32.totalorder %s25, 0
    %p156 = por %p154, %p155
    %p157 = scmp.ne.s32.totalorder %s145, %s146
    %p158 = scmp.eq.s32.totalorder %s26, 1
    %p159 = por %p157, %p158
    %p161 = scmp.ne.s32.totalorder %s146, %s160
    %p162 = scmp.eq.s32.totalorder %s26, 0
    %p163 = por %p161, %p162
    %s165 = sadd.s32 %s164, 1
    %p168 = scmp.eq.s32.totalorder %s20, 1
    %p169 = scmp.ne.s32.totalorder %s164, %s166
    %p170 = scmp.eq.s32.totalorder %s20, 0
    %p171 = por %p169, %p170
    %p172 = scmp.ne.s32.totalorder %s164, %s166
    %p173 = scmp.eq.s32.totalorder %s25, 1
    %p174 = por %p172, %p173
    %p175 = scmp.ne.s32.totalorder %s166, %s167
    %p176 = scmp.eq.s32.totalorder %s25, 0
    %p177 = por %p175, %p176
    %p178 = scmp.ne.s32.totalorder %s166, %s167
    %p179 = scmp.eq.s32.totalorder %s26, 1
    %p180 = por %p178, %p179
    %p182 = scmp.ne.s32.totalorder %s167, %s181
    %p183 = scmp.eq.s32.totalorder %s26, 0
    %p184 = por %p182, %p183
    %s186 = sadd.s32 %s185, 1
    %p189 = scmp.eq.s32.totalorder %s20, 1
    %p190 = scmp.ne.s32.totalorder %s185, %s187
    %p191 = scmp.eq.s32.totalorder %s20, 0
    %p192 = por %p190, %p191
    %p193 = scmp.ne.s32.totalorder %s185, %s187
    %p194 = scmp.eq.s32.totalorder %s25, 1
    %p195 = por %p193, %p194
    %p196 = scmp.ne.s32.totalorder %s187, %s188
    %p197 = scmp.eq.s32.totalorder %s25, 0
    %p198 = por %p196, %p197
    %p199 = scmp.ne.s32.totalorder %s187, %s188
    %p200 = scmp.eq.s32.totalorder %s26, 1
    %p201 = por %p199, %p200
    %p203 = scmp.ne.s32.totalorder %s188, %s202
    %p204 = scmp.eq.s32.totalorder %s26, 0
    %p205 = por %p203, %p204
    %s207 = sadd.s32 %s206, 1
    %p210 = scmp.eq.s32.totalorder %s20, 1
    %p211 = scmp.ne.s32.totalorder %s206, %s208
    %p212 = scmp.eq.s32.totalorder %s20, 0
    %p213 = por %p211, %p212
    %p214 = scmp.ne.s32.totalorder %s206, %s208
    %p215 = scmp.eq.s32.totalorder %s25, 1
    %p216 = por %p214, %p215
    %p217 = scmp.ne.s32.totalorder %s208, %s209
    %p218 = scmp.eq.s32.totalorder %s25, 0
    %p219 = por %p217, %p218
    %p220 = scmp.ne.s32.totalorder %s208, %s209
    %p221 = scmp.eq.s32.totalorder %s26, 1
    %p222 = por %p220, %p221
    %p224 = scmp.ne.s32.totalorder %s209, %s223
    %p225 = scmp.eq.s32.totalorder %s26, 0
    %p226 = por %p224, %p225
    %s228 = sadd.s32 %s227, 1
    %p231 = scmp.eq.s32.totalorder %s20, 1
    %p232 = scmp.ne.s32.totalorder %s227, %s229
    %p233 = scmp.eq.s32.totalorder %s20, 0
    %p234 = por %p232, %p233
    %p235 = scmp.ne.s32.totalorder %s227, %s229
    %p236 = scmp.eq.s32.totalorder %s25, 1
    %p237 = por %p235, %p236
    %p238 = scmp.ne.s32.totalorder %s229, %s230
    %p239 = scmp.eq.s32.totalorder %s25, 0
    %p240 = por %p238, %p239
    %p241 = scmp.ne.s32.totalorder %s229, %s230
    %p242 = scmp.eq.s32.totalorder %s26, 1
    %p243 = por %p241, %p242
    %p245 = scmp.ne.s32.totalorder %s230, %s244
    %p246 = scmp.eq.s32.totalorder %s26, 0
    %p247 = por %p245, %p246
    %s249 = sadd.s32 %s248, 1
    %p252 = scmp.eq.s32.totalorder %s20, 1
    %p253 = scmp.ne.s32.totalorder %s248, %s250
    %p254 = scmp.eq.s32.totalorder %s20, 0
    %p255 = por %p253, %p254
    %p256 = scmp.ne.s32.totalorder %s248, %s250
    %p257 = scmp.eq.s32.totalorder %s25, 1
    %p258 = por %p256, %p257
    %p259 = scmp.ne.s32.totalorder %s250, %s251
    %p260 = scmp.eq.s32.totalorder %s25, 0
    %p261 = por %p259, %p260
    %p262 = scmp.ne.s32.totalorder %s250, %s251
    %p263 = scmp.eq.s32.totalorder %s26, 1
    %p264 = por %p262, %p263
    %p266 = scmp.ne.s32.totalorder %s251, %s265
    %p267 = scmp.eq.s32.totalorder %s26, 0
    %p268 = por %p266, %p267
    %s270 = sadd.s32 %s269, 1
    %p273 = scmp.eq.s32.totalorder %s20, 1
    %p274 = scmp.ne.s32.totalorder %s269, %s271
    %p275 = scmp.eq.s32.totalorder %s20, 0
    %p276 = por %p274, %p275
    %p277 = scmp.ne.s32.totalorder %s269, %s271
    %p278 = scmp.eq.s32.totalorder %s25, 1
    %p279 = por %p277, %p278
    %p280 = scmp.ne.s32.totalorder %s271, %s272
    %p281 = scmp.eq.s32.totalorder %s25, 0
    %p282 = por %p280, %p281
    %p283 = scmp.ne.s32.totalorder %s271, %s272
    %p284 = scmp.eq.s32.totalorder %s26, 1
    %p285 = por %p283, %p284
    %p287 = scmp.ne.s32.totalorder %s272, %s286
    %p288 = scmp.eq.s32.totalorder %s26, 0
    %p289 = por %p287, %p288
    %s291 = sadd.s32 %s290, 1
    %p294 = scmp.eq.s32.totalorder %s20, 1
    %p295 = scmp.ne.s32.totalorder %s290, %s292
    %p296 = scmp.eq.s32.totalorder %s20, 0
    %p297 = por %p295, %p296
    %p298 = scmp.ne.s32.totalorder %s290, %s292
    %p299 = scmp.eq.s32.totalorder %s25, 1
    %p300 = por %p298, %p299
    %p301 = scmp.ne.s32.totalorder %s292, %s293
    %p302 = scmp.eq.s32.totalorder %s25, 0
    %p303 = por %p301, %p302
    %p304 = scmp.ne.s32.totalorder %s292, %s293
    %p305 = scmp.eq.s32.totalorder %s26, 1
    %p306 = por %p304, %p305
    %p308 = scmp.ne.s32.totalorder %s293, %s307
    %p309 = scmp.eq.s32.totalorder %s26, 0
    %p310 = por %p308, %p309
    %s312 = sadd.s32 %s311, 1
    %p315 = scmp.eq.s32.totalorder %s20, 1
    %p316 = scmp.ne.s32.totalorder %s311, %s313
    %p317 = scmp.eq.s32.totalorder %s20, 0
    %p318 = por %p316, %p317
    %p319 = scmp.ne.s32.totalorder %s311, %s313
    %p320 = scmp.eq.s32.totalorder %s25, 1
    %p321 = por %p319, %p320
    %p322 = scmp.ne.s32.totalorder %s313, %s314
    %p323 = scmp.eq.s32.totalorder %s25, 0
    %p324 = por %p322, %p323
    %p325 = scmp.ne.s32.totalorder %s313, %s314
    %p326 = scmp.eq.s32.totalorder %s26, 1
    %p327 = por %p325, %p326
    %p329 = scmp.ne.s32.totalorder %s314, %s328
    %p330 = scmp.eq.s32.totalorder %s26, 0
    %p331 = por %p329, %p330
    %s332 = ssub.s32 %s20, %s27
    %p333 = scmp.eq.s32.totalorder %s332, 0
    %s335 = sadd.s32 %s334, 1
    %s336 = scalar_select %p333, %s334, %s335
    %p339 = pneg %p333
    %p340 = scmp.eq.s32.totalorder %s20, 1
    %p341 = por %p339, %p340
    %p342 = scmp.ne.s32.totalorder %s334, %s337
    %p343 = scmp.eq.s32.totalorder %s20, 0
    %p344 = por %p342, %p343
    %p345 = scmp.ne.s32.totalorder %s334, %s337
    %p346 = scmp.eq.s32.totalorder %s25, 1
    %p347 = por %p345, %p346
    %p348 = scmp.ne.s32.totalorder %s337, %s338
    %p349 = scmp.eq.s32.totalorder %s25, 0
    %p350 = por %p348, %p349
    %p351 = scmp.ne.s32.totalorder %s337, %s338
    %p352 = scmp.eq.s32.totalorder %s26, 1
    %p353 = por %p351, %p352
    %p355 = scmp.ne.s32.totalorder %s338, %s354
    %p356 = scmp.eq.s32.totalorder %s26, 0
    %p357 = por %p355, %p356
    %p358 = scmp.le.s32.totalorder 1, %s20
    %p359 = scmp.lt.s32.totalorder %s20, 3
    %p360 = pnand %p358, %p359
    %p361 = pneg %p360
    // Predicated region
    $region9: #{tpu_custom_call.1} parent=5 // pred_check
      _
    $region10: #{tpu_custom_call.1} parent=5 // pred_check_branch
      %363 = sbr.rel (%p360) target = $region12
    $region11: #{tpu_custom_call.1} parent=5 // pred_region
      %s364 = ssub.s32 %s20, 1
      // Predicated region
      $region13: #{tpu_custom_call.1} parent=11 // pred_check
        %p365 = pneg %p93
      $region14: #{tpu_custom_call.1} parent=11 // pred_check_branch
        %367 = sbr.rel (%p365) target = $region16
      $region15: #{tpu_custom_call.1} parent=11 // pred_region
        _
      $region16: #{tpu_custom_call.1} parent=11 // pred_fallthru
        _
      // Predicated region
      $region17: #{tpu_custom_call.1} parent=11 // pred_check
        %p368 = pneg %p114
      $region18: #{tpu_custom_call.1} parent=11 // pred_check_branch
        %370 = sbr.rel (%p368) target = $region20
      $region19: #{tpu_custom_call.1} parent=11 // pred_region
        _
      $region20: #{tpu_custom_call.1} parent=11 // pred_fallthru
        _
      // Predicated region
      $region21: #{tpu_custom_call.1} parent=11 // pred_check
        %p371 = pneg %p135
      $region22: #{tpu_custom_call.1} parent=11 // pred_check_branch
        %373 = sbr.rel (%p371) target = $region24
      $region23: #{tpu_custom_call.1} parent=11 // pred_region
        _
      $region24: #{tpu_custom_call.1} parent=11 // pred_fallthru
        _
      // Predicated region
      $region25: #{tpu_custom_call.1} parent=11 // pred_check
        %p374 = pneg %p156
      $region26: #{tpu_custom_call.1} parent=11 // pred_check_branch
        %376 = sbr.rel (%p374) target = $region28
      $region27: #{tpu_custom_call.1} parent=11 // pred_region
        _
      $region28: #{tpu_custom_call.1} parent=11 // pred_fallthru
        _
      // Predicated region
      $region29: #{tpu_custom_call.1} parent=11 // pred_check
        %p377 = pneg %p177
      $region30: #{tpu_custom_call.1} parent=11 // pred_check_branch
        %379 = sbr.rel (%p377) target = $region32
      $region31: #{tpu_custom_call.1} parent=11 // pred_region
        _
      $region32: #{tpu_custom_call.1} parent=11 // pred_fallthru
        _
      // Predicated region
      $region33: #{tpu_custom_call.1} parent=11 // pred_check
        %p380 = pneg %p198
      $region34: #{tpu_custom_call.1} parent=11 // pred_check_branch
        %382 = sbr.rel (%p380) target = $region36
      $region35: #{tpu_custom_call.1} parent=11 // pred_region
        _
      $region36: #{tpu_custom_call.1} parent=11 // pred_fallthru
        _
      // Predicated region
      $region37: #{tpu_custom_call.1} parent=11 // pred_check
        %p383 = pneg %p219
      $region38: #{tpu_custom_call.1} parent=11 // pred_check_branch
        %385 = sbr.rel (%p383) target = $region40
      $region39: #{tpu_custom_call.1} parent=11 // pred_region
        _
      $region40: #{tpu_custom_call.1} parent=11 // pred_fallthru
        _
      // Predicated region
      $region41: #{tpu_custom_call.1} parent=11 // pred_check
        %p386 = pneg %p240
      $region42: #{tpu_custom_call.1} parent=11 // pred_check_branch
        %388 = sbr.rel (%p386) target = $region44
      $region43: #{tpu_custom_call.1} parent=11 // pred_region
        _
      $region44: #{tpu_custom_call.1} parent=11 // pred_fallthru
        _
      // Predicated region
      $region45: #{tpu_custom_call.1} parent=11 // pred_check
        %p389 = pneg %p261
      $region46: #{tpu_custom_call.1} parent=11 // pred_check_branch
        %391 = sbr.rel (%p389) target = $region48
      $region47: #{tpu_custom_call.1} parent=11 // pred_region
        _
      $region48: #{tpu_custom_call.1} parent=11 // pred_fallthru
        _
      // Predicated region
      $region49: #{tpu_custom_call.1} parent=11 // pred_check
        %p392 = pneg %p282
      $region50: #{tpu_custom_call.1} parent=11 // pred_check_branch
        %394 = sbr.rel (%p392) target = $region52
      $region51: #{tpu_custom_call.1} parent=11 // pred_region
        _
      $region52: #{tpu_custom_call.1} parent=11 // pred_fallthru
        _
      // Predicated region
      $region53: #{tpu_custom_call.1} parent=11 // pred_check
        %p395 = pneg %p303
      $region54: #{tpu_custom_call.1} parent=11 // pred_check_branch
        %397 = sbr.rel (%p395) target = $region56
      $region55: #{tpu_custom_call.1} parent=11 // pred_region
        _
      $region56: #{tpu_custom_call.1} parent=11 // pred_fallthru
        _
      // Predicated region
      $region57: #{tpu_custom_call.1} parent=11 // pred_check
        %p398 = pneg %p324
      $region58: #{tpu_custom_call.1} parent=11 // pred_check_branch
        %400 = sbr.rel (%p398) target = $region60
      $region59: #{tpu_custom_call.1} parent=11 // pred_region
        _
      $region60: #{tpu_custom_call.1} parent=11 // pred_fallthru
        _
    $region12: #{tpu_custom_call.1} parent=5 // pred_fallthru
      _
    %p401 = scmp.lt.s32.totalorder %s20, 2
    // Predicated region
    $region61: #{tpu_custom_call.1} parent=5 // pred_check
      %p402 = pneg %p401
    $region62: #{tpu_custom_call.1} parent=5 // pred_check_branch
      %404 = sbr.rel (%p402) target = $region64
    $region63: #{tpu_custom_call.1} parent=5 // pred_region
      // Predicated region
      $region65: #{tpu_custom_call.1} parent=63 // pred_check
        %p405 = pneg %p40
      $region66: #{tpu_custom_call.1} parent=63 // pred_check_branch
        %407 = sbr.rel (%p405) target = $region68
      $region67: #{tpu_custom_call.1} parent=63 // pred_region
        %s408 = smul.u32 8, %s20
        %p409 = scmp.lt.s32.totalorder %s408, 15
        %s410 = scalar_select %p409, %s408, 15
        %s411 = smul.addr %s410, 4
        %s412 = scalar_lea.vmem %s0, %s411
        %s413 = smul.u32 8, %s20
      $region68: #{tpu_custom_call.1} parent=63 // pred_fallthru
        _
      // Predicated region
      $region69: #{tpu_custom_call.1} parent=63 // pred_check
        %p414 = pneg %p66
      $region70: #{tpu_custom_call.1} parent=63 // pred_check_branch
        %416 = sbr.rel (%p414) target = $region72
      $region71: #{tpu_custom_call.1} parent=63 // pred_region
        %p417 = scmp.lt.s32.totalorder %s20, 1
        %s418 = scalar_select %p417, %s20, 1
        %s419 = smul.addr %s418, 8
        %s420 = scalar_lea.vmem %s1, %s419
      $region72: #{tpu_custom_call.1} parent=63 // pred_fallthru
        _
    $region64: #{tpu_custom_call.1} parent=5 // pred_fallthru
      _
    %p421 = scmp.le.s32.totalorder 1, %s20
    %p422 = scmp.lt.s32.totalorder %s20, 3
    %p423 = pnand %p421, %p422
    %p424 = pneg %p423
    // Predicated region
    $region73: #{tpu_custom_call.1} parent=5 // pred_check
      _
    $region74: #{tpu_custom_call.1} parent=5 // pred_check_branch
      %426 = sbr.rel (%p423) target = $region76
    $region75: #{tpu_custom_call.1} parent=5 // pred_region
      %s427 = ssub.s32 %s20, 1
      %s428 = smul.u32 8, %s25
      %p429 = scmp.lt.s32.totalorder %s428, 15
      %s430 = scalar_select %p429, %s428, 15
      %s431 = smul.addr %s430, 4
      %s432 = scalar_lea.vmem %s0, %s431
      %p433 = pneg %p46
      %p434 = pneg %p43
      %p435 = scmp.lt.s32.totalorder %s25, 1
      %s436 = scalar_select %p435, %s25, 1
      %s437 = smul.addr %s436, 8
      %s438 = scalar_lea.vmem %s1, %s437
      %p439 = pneg %p72
      %p440 = pneg %p69
      %p441 = pneg %p93
      %p442 = pneg %p90
      %p443 = pneg %p114
      %p444 = pneg %p111
      %p445 = pneg %p135
      %p446 = pneg %p132
      %p447 = pneg %p156
      %p448 = pneg %p153
      %p449 = pneg %p177
      %p450 = pneg %p174
      %p451 = pneg %p198
      %p452 = pneg %p195
      %p453 = pneg %p219
      %p454 = pneg %p216
      %p455 = pneg %p240
      %p456 = pneg %p237
      %p457 = pneg %p261
      %p458 = pneg %p258
      %p459 = pneg %p282
      %p460 = pneg %p279
      %p461 = pneg %p303
      %p462 = pneg %p300
      %p463 = pneg %p324
      %p464 = pneg %p321
      %p465 = pneg %p350
      %p466 = pneg %p347
      %p467 = scmp.lt.s32.totalorder %s25, 1
      %s468 = scalar_select %p467, %s25, 1
      %s469 = smul.addr %s468, 8
      %s470 = scalar_lea.vmem %s14, %s469
      %s471 = smul.u32 8, %s25
      %p472 = scmp.lt.s32.totalorder %s471, 15
      %s473 = scalar_select %p472, %s471, 15
      %s474 = smul.addr %s473, 4
      %s475 = scalar_lea.vmem %s0, %s474
      %s476 = smul.u32 8, %s25
      %p477 = scmp.lt.s32.totalorder %s25, 1
      %s478 = scalar_select %p477, %s25, 1
      %s479 = smul.addr %s478, 8
      %s480 = scalar_lea.vmem %s1, %s479
      %p481 = scmp.lt.s32.totalorder %s25, 1
      %s482 = scalar_select %p481, %s25, 1
      %s483 = smul.addr %s482, 8
      %s484 = scalar_lea.vmem %s14, %s483
      %v486 = vld [vmem:[%s475] sm:$0xf]
      %v487 = vld [vmem:[%s475 + $0x4] sm:$0xf]
      %v488 = vld [vmem:[%s475 + $0x8] sm:$0xf]
      %v489 = vld [vmem:[%s475 + $0xc] sm:$0xf]
      %v490 = vld [vmem:[%s475 + $0x10] sm:$0xf]
      %v491 = vld [vmem:[%s475 + $0x14] sm:$0xf]
      %v492 = vld [vmem:[%s475 + $0x18] sm:$0xf]
      %v493 = vld [vmem:[%s475 + $0x1c] sm:$0xf]
      %v494 = vld [vmem:[%s480] sm:$0xff]
      %v495 = vld [vmem:[%s2] sm:$0xf]
      %v496 = vld [vmem:[%s2 + $0x4] sm:$0x3]
      %v497 = vld [vmem:[%s3] sm:$0x1]
      %v499 = vperm.slane %v497, 0
      %v509 = vunpack.c.l.b16 %v486
      %v510 = vunpack.c.l.b16 %v487
      %v511 = vunpack.c.l.b16 %v488
      %v512 = vunpack.c.l.b16 %v489
      %v513 = vunpack.c.l.b16 %v490
      %v514 = vunpack.c.l.b16 %v491
      %v515 = vunpack.c.l.b16 %v492
      %v516 = vunpack.c.l.b16 %v493
      %v517 = vpack.c.b16 %v510, %v509
      %v518 = vpack.c.b16 %v512, %v511
      %v519 = vpack.c.b16 %v514, %v513
      %v520 = vpack.c.b16 %v516, %v515
      %v523 = vunpack.c.l.b16 %v495
      %v524 = vunpack.c.l.b16 %v496
      %v525 = vpack.c.b16 %v524, %v523
      %vm526 = vcmask 89088
      %v528 = vsel %vm526, %v517, 0
      %v531 = vsel %vm526, %v518, 0
      %v534 = vsel %vm526, %v519, 0
      %v537 = vsel %vm526, %v520, 0
      %vm539 = vcmask 1044480
      %vm540 = vcmask 1045504
      %v541 = vsel %vm539, 4294967295, 65535
      %v542 = vsel %vm540, %v541, 0
      %v544 = vand.u32 %v525, %v542
      %546 = vmatpush.bf16.msra.mxu0 0
      %547 = vmatpush.bf16.msra.mxu0 0
      %548 = vmatpush.bf16.msra.mxu0 0
      %549 = vmatpush.bf16.msra.mxu0 0
      %550 = vmatpush.bf16.msra.mxu0 0
      %551 = vmatpush.bf16.msra.mxu0 0
      %552 = vmatpush.bf16.msra.mxu0 0
      %553 = vmatpush.bf16.msra.mxu0 %v544
      %554 = vmatmul.bf16.gmra.mxu0 %v528
      %v555 = vpop.f32.mrf.mxu0
      %v556 = vadd.f32 %v499, %v555
      %v557 = vpop.f32.mrf.mxu0
      %v558 = vadd.f32 %v499, %v557
      %559 = vmatmul.bf16.gmra.mxu0 %v531
      %v560 = vpop.f32.mrf.mxu0
      %v561 = vadd.f32 %v499, %v560
      %v562 = vpop.f32.mrf.mxu0
      %v563 = vadd.f32 %v499, %v562
      %564 = vmatmul.bf16.gmra.mxu0 %v534
      %v565 = vpop.f32.mrf.mxu0
      %v566 = vadd.f32 %v499, %v565
      %v567 = vpop.f32.mrf.mxu0
      %v568 = vadd.f32 %v499, %v567
      %569 = vmatmul.bf16.gmra.mxu0 %v537
      %v570 = vpop.f32.mrf.mxu0
      %v571 = vadd.f32 %v499, %v570
      %v572 = vpop.f32.mrf.mxu0
      %v573 = vadd.f32 %v499, %v572
      %574 = vdwg.mxu0
      %v575 = vmax.f32 %v556, 0.0
      %v576 = vmax.f32 %v558, 0.0
      %v577 = vmax.f32 %v561, 0.0
      %v578 = vmax.f32 %v563, 0.0
      %v579 = vmax.f32 %v566, 0.0
      %v580 = vmax.f32 %v568, 0.0
      %v581 = vmax.f32 %v571, 0.0
      %v582 = vmax.f32 %v573, 0.0
      %v583 = vpack.c.bf16 %v576, %v575
      %v584 = vpack.c.bf16 %v578, %v577
      %v585 = vpack.c.bf16 %v580, %v579
      %v586 = vpack.c.bf16 %v582, %v581
      %v587 = vld [vmem:[%s4] sm:$0xf]
      %v588 = vld [vmem:[%s4 + $0x4] sm:$0xf]
      %v589 = vld [vmem:[%s4 + $0x8] sm:$0xf]
      %v590 = vld [vmem:[%s4 + $0xc] sm:$0xf]
      %v591 = vld [vmem:[%s4 + $0x10] sm:$0xf]
      %v592 = vld [vmem:[%s4 + $0x14] sm:$0xf]
      %v593 = vld [vmem:[%s4 + $0x18] sm:$0xf]
      %v594 = vld [vmem:[%s4 + $0x1c] sm:$0xf]
      %v595 = vld [vmem:[%s4 + $0x20] sm:$0xf]
      %v596 = vld [vmem:[%s4 + $0x24] sm:$0xf]
      %v597 = vld [vmem:[%s4 + $0x28] sm:$0xf]
      %v598 = vld [vmem:[%s4 + $0x2c] sm:$0xf]
      %v599 = vld [vmem:[%s4 + $0x30] sm:$0xf]
      %v600 = vld [vmem:[%s4 + $0x34] sm:$0xf]
      %v601 = vld [vmem:[%s4 + $0x38] sm:$0xf]
      %v602 = vld [vmem:[%s4 + $0x3c] sm:$0xf]
      %v603 = vld [vmem:[%s5] sm:$0x1]
      %v605 = vperm.slane %v603, 0
      %v623 = vunpack.c.l.b16 %v587
      %v624 = vunpack.c.l.b16 %v588
      %v625 = vunpack.c.l.b16 %v589
      %v626 = vunpack.c.l.b16 %v590
      %v627 = vunpack.c.l.b16 %v591
      %v628 = vunpack.c.l.b16 %v592
      %v629 = vunpack.c.l.b16 %v593
      %v630 = vunpack.c.l.b16 %v594
      %v631 = vunpack.c.l.b16 %v595
      %v632 = vunpack.c.l.b16 %v596
      %v633 = vunpack.c.l.b16 %v597
      %v634 = vunpack.c.l.b16 %v598
      %v635 = vunpack.c.l.b16 %v599
      %v636 = vunpack.c.l.b16 %v600
      %v637 = vunpack.c.l.b16 %v601
      %v638 = vunpack.c.l.b16 %v602
      %v639 = vpack.c.b16 %v624, %v623
      %v640 = vpack.c.b16 %v626, %v625
      %v641 = vpack.c.b16 %v628, %v627
      %v642 = vpack.c.b16 %v630, %v629
      %v643 = vpack.c.b16 %v632, %v631
      %v644 = vpack.c.b16 %v634, %v633
      %v645 = vpack.c.b16 %v636, %v635
      %v646 = vpack.c.b16 %v638, %v637
      %655 = vmatpush.bf16.msra.mxu0 %v646
      %656 = vmatpush.bf16.msra.mxu0 %v645
      %657 = vmatpush.bf16.msra.mxu0 %v644
      %658 = vmatpush.bf16.msra.mxu0 %v643
      %659 = vmatpush.bf16.msra.mxu0 %v642
      %660 = vmatpush.bf16.msra.mxu0 %v641
      %661 = vmatpush.bf16.msra.mxu0 %v640
      %662 = vmatpush.bf16.msra.mxu0 %v639
      %663 = vmatmul.bf16.gmra.mxu0 %v583
      %v664 = vpop.f32.mrf.mxu0
      %v665 = vadd.f32 %v605, %v664
      %v666 = vpop.f32.mrf.mxu0
      %v667 = vadd.f32 %v605, %v666
      %668 = vmatmul.bf16.gmra.mxu0 %v584
      %v669 = vpop.f32.mrf.mxu0
      %v670 = vadd.f32 %v605, %v669
      %v671 = vpop.f32.mrf.mxu0
      %v672 = vadd.f32 %v605, %v671
      %673 = vmatmul.bf16.gmra.mxu0 %v585
      %v674 = vpop.f32.mrf.mxu0
      %v675 = vadd.f32 %v605, %v674
      %v676 = vpop.f32.mrf.mxu0
      %v677 = vadd.f32 %v605, %v676
      %678 = vmatmul.bf16.gmra.mxu0 %v586
      %v679 = vpop.f32.mrf.mxu0
      %v680 = vadd.f32 %v605, %v679
      %v681 = vpop.f32.mrf.mxu0
      %v682 = vadd.f32 %v605, %v681
      %683 = vdwg.mxu0
      %v684 = vmax.f32 %v665, 0.0
      %v685 = vmax.f32 %v667, 0.0
      %v686 = vmax.f32 %v670, 0.0
      %v687 = vmax.f32 %v672, 0.0
      %v688 = vmax.f32 %v675, 0.0
      %v689 = vmax.f32 %v677, 0.0
      %v690 = vmax.f32 %v680, 0.0
      %v691 = vmax.f32 %v682, 0.0
      %v692 = vpack.c.bf16 %v685, %v684
      %v693 = vpack.c.bf16 %v687, %v686
      %v694 = vpack.c.bf16 %v689, %v688
      %v695 = vpack.c.bf16 %v691, %v690
      %v696 = vld [vmem:[%s6] sm:$0xf]
      %v697 = vld [vmem:[%s6 + $0x4] sm:$0xf]
      %v698 = vld [vmem:[%s6 + $0x8] sm:$0xf]
      %v699 = vld [vmem:[%s6 + $0xc] sm:$0xf]
      %v700 = vld [vmem:[%s6 + $0x10] sm:$0xf]
      %v701 = vld [vmem:[%s6 + $0x14] sm:$0xf]
      %v702 = vld [vmem:[%s6 + $0x18] sm:$0xf]
      %v703 = vld [vmem:[%s6 + $0x1c] sm:$0xf]
      %v704 = vld [vmem:[%s6 + $0x20] sm:$0xf]
      %v705 = vld [vmem:[%s6 + $0x24] sm:$0xf]
      %v706 = vld [vmem:[%s6 + $0x28] sm:$0xf]
      %v707 = vld [vmem:[%s6 + $0x2c] sm:$0xf]
      %v708 = vld [vmem:[%s6 + $0x30] sm:$0xf]
      %v709 = vld [vmem:[%s6 + $0x34] sm:$0xf]
      %v710 = vld [vmem:[%s6 + $0x38] sm:$0xf]
      %v711 = vld [vmem:[%s6 + $0x3c] sm:$0xf]
      %v712 = vld [vmem:[%s7] sm:$0x1]
      %v714 = vperm.slane %v712, 0
      %v732 = vunpack.c.l.b16 %v696
      %v733 = vunpack.c.l.b16 %v697
      %v734 = vunpack.c.l.b16 %v698
      %v735 = vunpack.c.l.b16 %v699
      %v736 = vunpack.c.l.b16 %v700
      %v737 = vunpack.c.l.b16 %v701
      %v738 = vunpack.c.l.b16 %v702
      %v739 = vunpack.c.l.b16 %v703
      %v740 = vunpack.c.l.b16 %v704
      %v741 = vunpack.c.l.b16 %v705
      %v742 = vunpack.c.l.b16 %v706
      %v743 = vunpack.c.l.b16 %v707
      %v744 = vunpack.c.l.b16 %v708
      %v745 = vunpack.c.l.b16 %v709
      %v746 = vunpack.c.l.b16 %v710
      %v747 = vunpack.c.l.b16 %v711
      %v748 = vpack.c.b16 %v733, %v732
      %v749 = vpack.c.b16 %v735, %v734
      %v750 = vpack.c.b16 %v737, %v736
      %v751 = vpack.c.b16 %v739, %v738
      %v752 = vpack.c.b16 %v741, %v740
      %v753 = vpack.c.b16 %v743, %v742
      %v754 = vpack.c.b16 %v745, %v744
      %v755 = vpack.c.b16 %v747, %v746
      %764 = vmatpush.bf16.msra.mxu0 %v755
      %765 = vmatpush.bf16.msra.mxu0 %v754
      %766 = vmatpush.bf16.msra.mxu0 %v753
      %767 = vmatpush.bf16.msra.mxu0 %v752
      %768 = vmatpush.bf16.msra.mxu0 %v751
      %769 = vmatpush.bf16.msra.mxu0 %v750
      %770 = vmatpush.bf16.msra.mxu0 %v749
      %771 = vmatpush.bf16.msra.mxu0 %v748
      %772 = vmatmul.bf16.gmra.mxu0 %v692
      %v773 = vpop.f32.mrf.mxu0
      %v774 = vadd.f32 %v714, %v773
      %v775 = vpop.f32.mrf.mxu0
      %v776 = vadd.f32 %v714, %v775
      %777 = vmatmul.bf16.gmra.mxu0 %v693
      %v778 = vpop.f32.mrf.mxu0
      %v779 = vadd.f32 %v714, %v778
      %v780 = vpop.f32.mrf.mxu0
      %v781 = vadd.f32 %v714, %v780
      %782 = vmatmul.bf16.gmra.mxu0 %v694
      %v783 = vpop.f32.mrf.mxu0
      %v784 = vadd.f32 %v714, %v783
      %v785 = vpop.f32.mrf.mxu0
      %v786 = vadd.f32 %v714, %v785
      %787 = vmatmul.bf16.gmra.mxu0 %v695
      %v788 = vpop.f32.mrf.mxu0
      %v789 = vadd.f32 %v714, %v788
      %v790 = vpop.f32.mrf.mxu0
      %v791 = vadd.f32 %v714, %v790
      %792 = vdwg.mxu0
      %vm793 = vcmask 523264
      %v794 = vsel %vm793, %v774, 0.0
      %795 = vadd.xlane.f32.xlu0 %v794
      %v796 = vpop.xlane.xlu0 %795
      %v797 = vsel %vm793, %v776, 0.0
      %798 = vadd.xlane.f32.xlu0 %v797
      %v799 = vpop.xlane.xlu0 %798
      %v800 = vsel %vm793, %v779, 0.0
      %801 = vadd.xlane.f32.xlu0 %v800
      %v802 = vpop.xlane.xlu0 %801
      %v803 = vsel %vm793, %v781, 0.0
      %804 = vadd.xlane.f32.xlu0 %v803
      %v805 = vpop.xlane.xlu0 %804
      %v806 = vsel %vm793, %v784, 0.0
      %807 = vadd.xlane.f32.xlu0 %v806
      %v808 = vpop.xlane.xlu0 %807
      %v809 = vsel %vm793, %v786, 0.0
      %810 = vadd.xlane.f32.xlu0 %v809
      %v811 = vpop.xlane.xlu0 %810
      %v812 = vsel %vm793, %v789, 0.0
      %813 = vadd.xlane.f32.xlu0 %v812
      %v814 = vpop.xlane.xlu0 %813
      %v815 = vsel %vm793, %v791, 0.0
      %816 = vadd.xlane.f32.xlu0 %v815
      %v817 = vpop.xlane.xlu0 %816
      %vm818 = vcmp.gt.f32.partialorder %v494, 0.5
      %v827 = vlaneseq
      %v828 = vand.u32 %v827, 127
      %v829 = vperm.slane %v796, %v828
      %v830 = vperm.slane %v799, %v828
      %v831 = vperm.slane %v802, %v828
      %v832 = vperm.slane %v805, %v828
      %v833 = vperm.slane %v808, %v828
      %v834 = vperm.slane %v811, %v828
      %v835 = vperm.slane %v814, %v828
      %v836 = vperm.slane %v817, %v828
      %vm837 = vcmask 1041409
      %v838 = vsel %vm837, %v830, %v829
      %vm839 = vcmask 1042434
      %v840 = vsel %vm839, %v831, %v838
      %vm841 = vcmask 1043459
      %v842 = vsel %vm841, %v832, %v840
      %vm843 = vcmask 1044484
      %v844 = vsel %vm843, %v833, %v842
      %vm845 = vcmask 1045509
      %v846 = vsel %vm845, %v834, %v844
      %vm847 = vcmask 1046534
      %v848 = vsel %vm847, %v835, %v846
      %vm849 = vcmask 1047559
      %v850 = vsel %vm849, %v836, %v848
      %v852 = vsel %vm818, %v850, -1e+09
      %vm853 = vcmask 64512
      %v854 = vsel %vm853, %v852, -inf
      %855 = vmax.xlane.f32.xlu0 %v854
      %v856 = vpop.xlane.xlu0 %855
      %v857 = vsub.f32 %v852, %v856
      %v858 = vmul.f32 %v857, 1.442695
      %v859 = vpow.pop %v858
      %v860 = vsel %vm853, %v859, 0.0
      %861 = vadd.xlane.f32.xlu0 %v860
      %v862 = vpop.xlane.xlu0 %861
      %v863 = vrcp.pop %v862
      %v864 = vmul.f32 %v862, %v863
      %v865 = vsub.f32 1.0, %v864
      %v866 = vmul.f32 %v863, %v865
      %v867 = vadd.f32 %v863, %v866
      %vm868 = vweird.f32 %v862
      %vm869 = vweird.f32 %v863
      %vm870 = vmor %vm868, %vm869
      %v871 = vsel %vm870, %v863, %v867
      %v872 = vand.u32 2147483647, %v862
      %vm873 = vcmp.eq.f32.partialorder %v872, 8.507059e+37
      %v874 = vand.u32 %v862, 2147483648
      %v875 = vor.u32 1.1754944e-38, %v874
      %v876 = vsel %vm873, %v875, %v871
      %v877 = vmul.f32 %v859, %v876
      %v878 = vmul.f32 %v877, %v494
      %v879 = vperm.slane %v878, 0
      %v880 = vlaneseq
      %v881 = vshrl.u32 %v880, 7
      %883 = vset.pattern.permute.xlu0 %v881
      %884 = vperm.xlu0 %883, %v879
      %v885 = vpop.permute.xlu0 %884
      %v886 = vperm.slane %v878, 1
      %v887 = vlaneseq
      %v888 = vshrl.u32 %v887, 7
      %890 = vset.pattern.permute.xlu0 %v888
      %891 = vperm.xlu0 %890, %v886
      %v892 = vpop.permute.xlu0 %891
      %v893 = vperm.slane %v878, 2
      %v894 = vlaneseq
      %v895 = vshrl.u32 %v894, 7
      %897 = vset.pattern.permute.xlu0 %v895
      %898 = vperm.xlu0 %897, %v893
      %v899 = vpop.permute.xlu0 %898
      %v900 = vperm.slane %v878, 3
      %v901 = vlaneseq
      %v902 = vshrl.u32 %v901, 7
      %904 = vset.pattern.permute.xlu0 %v902
      %905 = vperm.xlu0 %904, %v900
      %v906 = vpop.permute.xlu0 %905
      %v907 = vperm.slane %v878, 4
      %v908 = vlaneseq
      %v909 = vshrl.u32 %v908, 7
      %911 = vset.pattern.permute.xlu0 %v909
      %912 = vperm.xlu0 %911, %v907
      %v913 = vpop.permute.xlu0 %912
      %v914 = vperm.slane %v878, 5
      %v915 = vlaneseq
      %v916 = vshrl.u32 %v915, 7
      %918 = vset.pattern.permute.xlu0 %v916
      %919 = vperm.xlu0 %918, %v914
      %v920 = vpop.permute.xlu0 %919
      %v921 = vperm.slane %v878, 6
      %v922 = vlaneseq
      %v923 = vshrl.u32 %v922, 7
      %925 = vset.pattern.permute.xlu0 %v923
      %926 = vperm.xlu0 %925, %v921
      %v927 = vpop.permute.xlu0 %926
      %v928 = vperm.slane %v878, 7
      %v929 = vlaneseq
      %v930 = vshrl.u32 %v929, 7
      %932 = vset.pattern.permute.xlu0 %v930
      %933 = vperm.xlu0 %932, %v928
      %v934 = vpop.permute.xlu0 %933
      %v935 = vmul.f32 %v774, %v885
      %v936 = vmul.f32 %v776, %v892
      %v937 = vmul.f32 %v779, %v899
      %v938 = vmul.f32 %v781, %v906
      %v939 = vmul.f32 %v784, %v913
      %v940 = vmul.f32 %v786, %v920
      %v941 = vmul.f32 %v789, %v927
      %v942 = vmul.f32 %v791, %v934
      %v943 = vsel %vm793, %v935, 0.0
      %v944 = vrot.slane %v943, 4
      %v945 = vadd.f32 %v943, %v944
      %v946 = vrot.slane %v945, 2
      %v947 = vadd.f32 %v945, %v946
      %v948 = vrot.slane %v947, 1
      %v949 = vadd.f32 %v947, %v948
      %v950 = vsel %vm793, %v936, 0.0
      %v951 = vrot.slane %v950, 4
      %v952 = vadd.f32 %v950, %v951
      %v953 = vrot.slane %v952, 2
      %v954 = vadd.f32 %v952, %v953
      %v955 = vrot.slane %v954, 1
      %v956 = vadd.f32 %v954, %v955
      %v957 = vsel %vm793, %v937, 0.0
      %v958 = vrot.slane %v957, 4
      %v959 = vadd.f32 %v957, %v958
      %v960 = vrot.slane %v959, 2
      %v961 = vadd.f32 %v959, %v960
      %v962 = vrot.slane %v961, 1
      %v963 = vadd.f32 %v961, %v962
      %v964 = vsel %vm793, %v938, 0.0
      %v965 = vrot.slane %v964, 4
      %v966 = vadd.f32 %v964, %v965
      %v967 = vrot.slane %v966, 2
      %v968 = vadd.f32 %v966, %v967
      %v969 = vrot.slane %v968, 1
      %v970 = vadd.f32 %v968, %v969
      %v971 = vsel %vm793, %v939, 0.0
      %v972 = vrot.slane %v971, 4
      %v973 = vadd.f32 %v971, %v972
      %v974 = vrot.slane %v973, 2
      %v975 = vadd.f32 %v973, %v974
      %v976 = vrot.slane %v975, 1
      %v977 = vadd.f32 %v975, %v976
      %v978 = vsel %vm793, %v940, 0.0
      %v979 = vrot.slane %v978, 4
      %v980 = vadd.f32 %v978, %v979
      %v981 = vrot.slane %v980, 2
      %v982 = vadd.f32 %v980, %v981
      %v983 = vrot.slane %v982, 1
      %v984 = vadd.f32 %v982, %v983
      %v985 = vsel %vm793, %v941, 0.0
      %v986 = vrot.slane %v985, 4
      %v987 = vadd.f32 %v985, %v986
      %v988 = vrot.slane %v987, 2
      %v989 = vadd.f32 %v987, %v988
      %v990 = vrot.slane %v989, 1
      %v991 = vadd.f32 %v989, %v990
      %v992 = vsel %vm793, %v942, 0.0
      %v993 = vrot.slane %v992, 4
      %v994 = vadd.f32 %v992, %v993
      %v995 = vrot.slane %v994, 2
      %v996 = vadd.f32 %v994, %v995
      %v997 = vrot.slane %v996, 1
      %v998 = vadd.f32 %v996, %v997
      %v999 = vpack.c.bf16 %v949, %v949
      %v1000 = vpack.c.bf16 %v956, %v956
      %v1001 = vpack.c.bf16 %v963, %v963
      %v1002 = vpack.c.bf16 %v970, %v970
      %v1003 = vpack.c.bf16 %v977, %v977
      %v1004 = vpack.c.bf16 %v984, %v984
      %v1005 = vpack.c.bf16 %v991, %v991
      %v1006 = vpack.c.bf16 %v998, %v998
      %v1007 = vld [vmem:[%s8] sm:$0xf]
      %v1008 = vld [vmem:[%s8 + $0x4] sm:$0xf]
      %v1009 = vld [vmem:[%s8 + $0x8] sm:$0xf]
      %v1010 = vld [vmem:[%s8 + $0xc] sm:$0xf]
      %v1011 = vld [vmem:[%s8 + $0x10] sm:$0xf]
      %v1012 = vld [vmem:[%s8 + $0x14] sm:$0xf]
      %v1013 = vld [vmem:[%s8 + $0x18] sm:$0xf]
      %v1014 = vld [vmem:[%s8 + $0x1c] sm:$0xf]
      %v1015 = vld [vmem:[%s9] sm:$0x1]
      %v1017 = vperm.slane %v1015, 0
      %v1027 = vunpack.c.l.b16 %v999
      %v1028 = vunpack.c.l.b16 %v1000
      %v1029 = vunpack.c.l.b16 %v1001
      %v1030 = vunpack.c.l.b16 %v1002
      %v1031 = vunpack.c.l.b16 %v1003
      %v1032 = vunpack.c.l.b16 %v1004
      %v1033 = vunpack.c.l.b16 %v1005
      %v1034 = vunpack.c.l.b16 %v1006
      %v1035 = vsel %vm837, %v1028, %v1027
      %v1036 = vsel %vm839, %v1029, %v1035
      %v1037 = vsel %vm841, %v1030, %v1036
      %v1038 = vsel %vm843, %v1031, %v1037
      %v1039 = vsel %vm845, %v1032, %v1038
      %v1040 = vsel %vm847, %v1033, %v1039
      %v1041 = vsel %vm849, %v1034, %v1040
      %v1042 = vpack.c.b16 %v1041, %v1041
      %v1051 = vunpack.c.l.b16 %v1007
      %v1052 = vunpack.c.l.b16 %v1008
      %v1053 = vunpack.c.l.b16 %v1009
      %v1054 = vunpack.c.l.b16 %v1010
      %v1055 = vunpack.c.l.b16 %v1011
      %v1056 = vunpack.c.l.b16 %v1012
      %v1057 = vunpack.c.l.b16 %v1013
      %v1058 = vunpack.c.l.b16 %v1014
      %v1059 = vpack.c.b16 %v1052, %v1051
      %v1060 = vpack.c.b16 %v1054, %v1053
      %v1061 = vpack.c.b16 %v1056, %v1055
      %v1062 = vpack.c.b16 %v1058, %v1057
      %v1068 = vsel %vm793, %v1042, 0
      %1070 = vmatpush.bf16.msra.mxu0 0
      %1071 = vmatpush.bf16.msra.mxu0 0
      %1072 = vmatpush.bf16.msra.mxu0 0
      %1073 = vmatpush.bf16.msra.mxu0 0
      %1074 = vmatpush.bf16.msra.mxu0 %v1062
      %1075 = vmatpush.bf16.msra.mxu0 %v1061
      %1076 = vmatpush.bf16.msra.mxu0 %v1060
      %1077 = vmatpush.bf16.msra.mxu0 %v1059
      %1078 = vmatmul.bf16.gmra.mxu0 %v1068
      %v1079 = vpop.f32.mrf.mxu0
      %v1080 = vadd.f32 %v1017, %v1079
      %v1081 = vpop.f32.mrf.mxu0
      %1082 = vdwg.mxu0
      %v1083 = vmax.f32 %v1080, 0.0
      %v1084 = vpack.c.bf16 %v1083, %v1083
      %v1085 = vld [vmem:[%s10] sm:$0xf]
      %v1086 = vld [vmem:[%s10 + $0x4] sm:$0xf]
      %v1087 = vld [vmem:[%s10 + $0x8] sm:$0xf]
      %v1088 = vld [vmem:[%s10 + $0xc] sm:$0xf]
      %v1089 = vld [vmem:[%s10 + $0x10] sm:$0xf]
      %v1090 = vld [vmem:[%s10 + $0x14] sm:$0xf]
      %v1091 = vld [vmem:[%s10 + $0x18] sm:$0xf]
      %v1092 = vld [vmem:[%s10 + $0x1c] sm:$0xf]
      %v1093 = vld [vmem:[%s10 + $0x20] sm:$0xf]
      %v1094 = vld [vmem:[%s10 + $0x24] sm:$0xf]
      %v1095 = vld [vmem:[%s10 + $0x28] sm:$0xf]
      %v1096 = vld [vmem:[%s10 + $0x2c] sm:$0xf]
      %v1097 = vld [vmem:[%s10 + $0x30] sm:$0xf]
      %v1098 = vld [vmem:[%s10 + $0x34] sm:$0xf]
      %v1099 = vld [vmem:[%s10 + $0x38] sm:$0xf]
      %v1100 = vld [vmem:[%s10 + $0x3c] sm:$0xf]
      %v1101 = vld [vmem:[%s11] sm:$0x1]
      %v1103 = vperm.slane %v1101, 0
      %v1121 = vunpack.c.l.b16 %v1085
      %v1122 = vunpack.c.l.b16 %v1086
      %v1123 = vunpack.c.l.b16 %v1087
      %v1124 = vunpack.c.l.b16 %v1088
      %v1125 = vunpack.c.l.b16 %v1089
      %v1126 = vunpack.c.l.b16 %v1090
      %v1127 = vunpack.c.l.b16 %v1091
      %v1128 = vunpack.c.l.b16 %v1092
      %v1129 = vunpack.c.l.b16 %v1093
      %v1130 = vunpack.c.l.b16 %v1094
      %v1131 = vunpack.c.l.b16 %v1095
      %v1132 = vunpack.c.l.b16 %v1096
      %v1133 = vunpack.c.l.b16 %v1097
      %v1134 = vunpack.c.l.b16 %v1098
      %v1135 = vunpack.c.l.b16 %v1099
      %v1136 = vunpack.c.l.b16 %v1100
      %v1137 = vpack.c.b16 %v1122, %v1121
      %v1138 = vpack.c.b16 %v1124, %v1123
      %v1139 = vpack.c.b16 %v1126, %v1125
      %v1140 = vpack.c.b16 %v1128, %v1127
      %v1141 = vpack.c.b16 %v1130, %v1129
      %v1142 = vpack.c.b16 %v1132, %v1131
      %v1143 = vpack.c.b16 %v1134, %v1133
      %v1144 = vpack.c.b16 %v1136, %v1135
      %1153 = vmatpush.bf16.msra.mxu0 %v1144
      %1154 = vmatpush.bf16.msra.mxu0 %v1143
      %1155 = vmatpush.bf16.msra.mxu0 %v1142
      %1156 = vmatpush.bf16.msra.mxu0 %v1141
      %1157 = vmatpush.bf16.msra.mxu0 %v1140
      %1158 = vmatpush.bf16.msra.mxu0 %v1139
      %1159 = vmatpush.bf16.msra.mxu0 %v1138
      %1160 = vmatpush.bf16.msra.mxu0 %v1137
      %1161 = vmatmul.bf16.gmra.mxu0 %v1084
      %v1162 = vpop.f32.mrf.mxu0
      %v1163 = vadd.f32 %v1103, %v1162
      %v1164 = vpop.f32.mrf.mxu0
      %1165 = vdwg.mxu0
      %v1166 = vmax.f32 %v1163, 0.0
      %v1167 = vpack.c.bf16 %v1166, %v1166
      %v1168 = vld [vmem:[%s12] sm:$0xf]
      %v1169 = vld [vmem:[%s12 + $0x4] sm:$0xf]
      %v1170 = vld [vmem:[%s12 + $0x8] sm:$0xf]
      %v1171 = vld [vmem:[%s12 + $0xc] sm:$0xf]
      %v1172 = vld [vmem:[%s12 + $0x10] sm:$0xf]
      %v1173 = vld [vmem:[%s12 + $0x14] sm:$0xf]
      %v1174 = vld [vmem:[%s12 + $0x18] sm:$0xf]
      %v1175 = vld [vmem:[%s12 + $0x1c] sm:$0xf]
      %v1176 = vld [vmem:[%s12 + $0x20] sm:$0xf]
      %v1177 = vld [vmem:[%s12 + $0x24] sm:$0xf]
      %v1178 = vld [vmem:[%s12 + $0x28] sm:$0xf]
      %v1179 = vld [vmem:[%s12 + $0x2c] sm:$0xf]
      %v1180 = vld [vmem:[%s12 + $0x30] sm:$0xf]
      %v1181 = vld [vmem:[%s12 + $0x34] sm:$0xf]
      %v1182 = vld [vmem:[%s12 + $0x38] sm:$0xf]
      %v1183 = vld [vmem:[%s12 + $0x3c] sm:$0xf]
      %v1184 = vld [vmem:[%s13] sm:$0x1]
      %v1186 = vperm.slane %v1184, 0
      %v1204 = vunpack.c.l.b16 %v1168
      %v1205 = vunpack.c.l.b16 %v1169
      %v1206 = vunpack.c.l.b16 %v1170
      %v1207 = vunpack.c.l.b16 %v1171
      %v1208 = vunpack.c.l.b16 %v1172
      %v1209 = vunpack.c.l.b16 %v1173
      %v1210 = vunpack.c.l.b16 %v1174
      %v1211 = vunpack.c.l.b16 %v1175
      %v1212 = vunpack.c.l.b16 %v1176
      %v1213 = vunpack.c.l.b16 %v1177
      %v1214 = vunpack.c.l.b16 %v1178
      %v1215 = vunpack.c.l.b16 %v1179
      %v1216 = vunpack.c.l.b16 %v1180
      %v1217 = vunpack.c.l.b16 %v1181
      %v1218 = vunpack.c.l.b16 %v1182
      %v1219 = vunpack.c.l.b16 %v1183
      %v1220 = vpack.c.b16 %v1205, %v1204
      %v1221 = vpack.c.b16 %v1207, %v1206
      %v1222 = vpack.c.b16 %v1209, %v1208
      %v1223 = vpack.c.b16 %v1211, %v1210
      %v1224 = vpack.c.b16 %v1213, %v1212
      %v1225 = vpack.c.b16 %v1215, %v1214
      %v1226 = vpack.c.b16 %v1217, %v1216
      %v1227 = vpack.c.b16 %v1219, %v1218
      %1236 = vmatpush.bf16.msra.mxu0 %v1227
      %1237 = vmatpush.bf16.msra.mxu0 %v1226
      %1238 = vmatpush.bf16.msra.mxu0 %v1225
      %1239 = vmatpush.bf16.msra.mxu0 %v1224
      %1240 = vmatpush.bf16.msra.mxu0 %v1223
      %1241 = vmatpush.bf16.msra.mxu0 %v1222
      %1242 = vmatpush.bf16.msra.mxu0 %v1221
      %1243 = vmatpush.bf16.msra.mxu0 %v1220
      %1244 = vmatmul.bf16.gmra.mxu0 %v1167
      %v1245 = vpop.f32.mrf.mxu0
      %v1246 = vadd.f32 %v1186, %v1245
      %v1247 = vpop.f32.mrf.mxu0
      %1248 = vdwg.mxu0
      %vm1249 = vcmask 23552
      %1250 = vst.msk [vmem:[%s484] sm:$0xff] %vm1249, %v1246
      %p1251 = scmp.lt.s32.totalorder %s25, 1
      %s1252 = scalar_select %p1251, %s25, 1
      %s1253 = smul.addr %s1252, 8
      %s1254 = scalar_lea.vmem %s14, %s1253
      // Predicated region
      $region77: #{tpu_custom_call.1} parent=75 // pred_check
        %p1255 = pneg %p347
      $region78: #{tpu_custom_call.1} parent=75 // pred_check_branch
        %1257 = sbr.rel (%p1255) target = $region80
      $region79: #{tpu_custom_call.1} parent=75 // pred_region
        _
      $region80: #{tpu_custom_call.1} parent=75 // pred_fallthru
        _
    $region76: #{tpu_custom_call.1} parent=5 // pred_fallthru
      _
    %p1258 = scmp.le.s32.totalorder 2, %s20
    // Predicated region
    $region81: #{tpu_custom_call.1} parent=5 // pred_check
      %p1259 = pneg %p1258
    $region82: #{tpu_custom_call.1} parent=5 // pred_check_branch
      %1261 = sbr.rel (%p1259) target = $region84
    $region83: #{tpu_custom_call.1} parent=5 // pred_region
      %s1262 = ssub.s32 %s20, 2
      // Predicated region
      $region85: #{tpu_custom_call.1} parent=83 // pred_check
        %p1263 = pneg %p353
      $region86: #{tpu_custom_call.1} parent=83 // pred_check_branch
        %1265 = sbr.rel (%p1263) target = $region88
      $region87: #{tpu_custom_call.1} parent=83 // pred_region
        %p1266 = scmp.lt.s32.totalorder %s26, 1
        %s1267 = scalar_select %p1266, %s26, 1
        %s1268 = smul.addr %s1267, 8
        %s1269 = scalar_lea.vmem %s14, %s1268
      $region88: #{tpu_custom_call.1} parent=83 // pred_fallthru
        _
    $region84: #{tpu_custom_call.1} parent=5 // pred_fallthru
      _
  $region6: #{tpu_custom_call.1} parent=0 // loop_footer
    %s24 = sadd.s32 1, %s20
  $region7: #{tpu_custom_call.1} parent=0 // loop_footer_branch
    %19 = sbr.rel target = $region3
  $region8: #{tpu_custom_call.1} parent=0 // loop_exit
    _

</llo_original>
